<compile_context>
chip_gen: v6e
topology: v6e:2x2x1
jax: 0.10.0
libtpu: 0.0.40
codegen_flags: <defaults>
</compile_context>

<pallas_src>
import functools

import jax
import jax.numpy as jnp
from jax.experimental import pallas as pl
from jax.experimental.pallas import tpu as pltpu


def _round_up(x, m):
    return ((x + m - 1) // m) * m


@functools.lru_cache(maxsize=1)
def _vmem_limit_bytes():
    """~75% of physical VMEM per core (96 MiB v5e/v6e, 48 MiB v7x)."""
    try:
        cap = int(pltpu.get_tpu_info().vmem_capacity_bytes)
        return (cap * 3) // 4
    except Exception:
        return 48 << 20  # conservative: fits every generation incl. v7x


def _plan_kn(feature_in, feature_out, tn, tk):
    """Clamp K/N tiles and compute padded K/N.  Shared by prepare + forward."""
    tn = min(tn, _round_up(feature_out, 128))
    tk = min(tk, _round_up(feature_in, 128))
    n_pad = _round_up(feature_out, tn)
    k_pad = _round_up(feature_in, tk)
    return tn, tk, n_pad, k_pad


def _split_tile_for_cores(dim_padded, tile):
    """Largest multiple-of-128 tile dividing dim_padded into >= 2 tiles."""
    t = (dim_padded // 2) // 128 * 128
    while t >= 128:
        if dim_padded % t == 0:
            return t
        t -= 128
    return tile


# ----------------------------- kernels --------------------------------------


def _linear_kernel_accum_out(x_ref, wt_ref, b_ref, o_ref):
    """f32 output: accumulate straight into the resident output block."""
    @pl.when(pl.program_id(2) == 0)
    def _():
        o_ref[...] = jnp.broadcast_to(b_ref[...].astype(jnp.float32), o_ref.shape)

    o_ref[...] += jnp.dot(x_ref[...], wt_ref[...], preferred_element_type=jnp.float32)


def _linear_kernel_accum_scratch(x_ref, wt_ref, b_ref, o_ref, acc_ref):
    """Narrow output dtypes: f32 VMEM accumulator + cast epilogue."""
    k = pl.program_id(2)

    @pl.when(k == 0)
    def _():
        acc_ref[...] = jnp.zeros_like(acc_ref)

    acc_ref[...] += jnp.dot(x_ref[...], wt_ref[...], preferred_element_type=jnp.float32)

    @pl.when(k == pl.num_programs(2) - 1)
    def _():
        o_ref[...] = (acc_ref[...] + b_ref[...].astype(jnp.float32)).astype(o_ref.dtype)


def _linear_kernel_whole(x_ref, w_ref, b_ref, o_ref):
    """Tiny-shape fast path: whole arrays in VMEM, contract K with K directly."""
    y = jax.lax.dot_general(
        x_ref[...], w_ref[...],
        dimension_numbers=(((1,), (1,)), ((), ())),
        preferred_element_type=jnp.float32,
    )
    o_ref[...] = (y + b_ref[...].astype(jnp.float32)).astype(o_ref.dtype)


# ----------------------------- forward paths --------------------------------


@functools.partial(
    jax.jit, static_argnames=("feature_out", "tm", "tn", "tk", "compute_dtype")
)
def _forward_prepared(x, wt_p, b_p, *, feature_out, tm, tn, tk, compute_dtype):
    """Tiled forward using a pre-transposed / pre-padded (K, N) weight."""
    B, feature_in = x.shape
    K, N = wt_p.shape
    out_dtype = x.dtype

    tm = min(tm, _round_up(B, 128))
    M = _round_up(B, tm)

    # v7x has 2 TensorCores: ensure >= 2 parallel tiles when N allows it.
    if (M // tm) * (N // tn) < 2 and N >= 256:
        tn = _split_tile_for_cores(N, tn)

    # Only per-call layout work left: cast+pad the activations.
    x_p = jnp.pad(x.astype(compute_dtype), ((0, M - B), (0, K - feature_in)))

    grid = (M // tm, N // tn, K // tk)

    if out_dtype == jnp.float32:
        kernel, scratch = _linear_kernel_accum_out, []
    else:
        kernel = _linear_kernel_accum_scratch
        scratch = [pltpu.VMEM((tm, tn), jnp.float32)]

    out_padded = pl.pallas_call(
        kernel,
        out_shape=jax.ShapeDtypeStruct((M, N), out_dtype),
        grid_spec=pltpu.PrefetchScalarGridSpec(
            num_scalar_prefetch=0,
            grid=grid,
            in_specs=[
                pl.BlockSpec((tm, tk), lambda i, j, k: (i, k)),   # x tile
                pl.BlockSpec((tk, tn), lambda i, j, k: (k, j)),   # W^T tile
                pl.BlockSpec((1, tn), lambda i, j, k: (0, j)),    # bias tile
            ],
            out_specs=pl.BlockSpec((tm, tn), lambda i, j, k: (i, j)),
            scratch_shapes=scratch,
        ),
        compiler_params=pltpu.CompilerParams(
            dimension_semantics=("parallel", "parallel", "arbitrary"),
            vmem_limit_bytes=_vmem_limit_bytes(),
        ),
    )(x_p, wt_p, b_p)

    return out_padded[:B, :feature_out]


@jax.jit
def _forward_small(x, weight, bias):
    """Tiny-shape fast path: no pad / transpose / slice / 3-D grid."""
    B = x.shape[0]
    N = weight.shape[0]
    return pl.pallas_call(
        _linear_kernel_whole,
        out_shape=jax.ShapeDtypeStruct((B, N), x.dtype),
        in_specs=[pl.BlockSpec(memory_space=pltpu.MemorySpace.VMEM)] * 3,
        out_specs=pl.BlockSpec(memory_space=pltpu.MemorySpace.VMEM),
        compiler_params=pltpu.CompilerParams(
            vmem_limit_bytes=_vmem_limit_bytes(),
        ),
    )(x, weight, bias.reshape(1, N))


class PallasBasicExpert:
    """BasicExpert (nn.Linear) with the weight layout work hoisted to init."""

    def __init__(self, weight, bias, *, compute_dtype=jnp.bfloat16,
                 tm=512, tn=512, tk=512):
        # weight: (feature_out, feature_in)  -- PyTorch nn.Linear layout
        # bias:   (feature_out,)
        feature_out, feature_in = weight.shape
        tn_c, tk_c, n_pad, k_pad = _plan_kn(feature_in, feature_out, tn, tk)

        # One-time layout work: transpose to (K, N), cast to the MXU compute
        # dtype, zero-pad to tile multiples (lane-dense, unmasked stores).
        wt = jnp.transpose(weight).astype(compute_dtype)          # (K, N) logical
        self.wt_p = jnp.pad(wt, ((0, k_pad - feature_in), (0, n_pad - feature_out)))
        self.b_p = jnp.pad(
            bias.astype(jnp.float32), (0, n_pad - feature_out)
        ).reshape(1, n_pad)

        self.feature_in = feature_in
        self.feature_out = feature_out
        self.tm, self.tn, self.tk = tm, tn_c, tk_c
        self.compute_dtype = compute_dtype

    def __call__(self, x):
        return _forward_prepared(
            x, self.wt_p, self.b_p,
            feature_out=self.feature_out,
            tm=self.tm, tn=self.tn, tk=self.tk,
            compute_dtype=self.compute_dtype,
        )


def basic_expert_forward(x, weight, bias, *, compute_dtype=jnp.bfloat16,
                         tm=512, tn=512, tk=512):
    """One-shot convenience wrapper.  Use PallasBasicExpert for repeated calls."""
    B, feature_in = x.shape
    feature_out = weight.shape[0]
    if B <= 256 and feature_in <= 1024 and feature_out <= 1024:
        return _forward_small(x, weight, bias)
    expert = PallasBasicExpert(weight, bias, compute_dtype=compute_dtype,
                               tm=tm, tn=tn, tk=tk)
    return expert(x)


if __name__ == "__main__":
    key = jax.random.PRNGKey(0)

    # --- Small: BasicExpert(feature_in=32, feature_out=16), batch=8 ----------
    feature_in, feature_out, batch = 32, 16, 8
    kx, kw, kb, key = jax.random.split(key, 4)
    x = jax.random.normal(kx, (batch, feature_in), dtype=jnp.float32)
    bound = 1.0 / (feature_in ** 0.5)
    weight = jax.random.uniform(kw, (feature_out, feature_in),
                                minval=-bound, maxval=bound, dtype=jnp.float32)
    bias = jax.random.uniform(kb, (feature_out,),
                              minval=-bound, maxval=bound, dtype=jnp.float32)
    y_ref = x @ weight.T + bias

    # tiny-shape fast path (whole-array blocks, original dtype)
    y_fast = jax.block_until_ready(basic_expert_forward(x, weight, bias))
    assert y_fast.shape == (batch, feature_out)
    assert jnp.allclose(y_fast, y_ref, atol=2e-2, rtol=2e-2), "fast-path mismatch"

    # hoisted-prep tiled path (bf16 MXU operands, f32 accumulate)
    expert = PallasBasicExpert(weight, bias)
    y = jax.block_until_ready(expert(x))
    assert y.shape == (batch, feature_out)
    assert jnp.allclose(y, y_ref, atol=2e-2, rtol=2e-2), "small tiled mismatch"

    # --- Larger: exercises N tiling + two-core split (grid (1, 3, 1)) --------
    fi2, fo2, b2 = 512, 384, 384
    kx2, kw2, kb2, key = jax.random.split(key, 4)
    x2 = jax.random.normal(kx2, (b2, fi2), dtype=jnp.float32)
    bound2 = 1.0 / (fi2 ** 0.5)
    weight2 = jax.random.uniform(kw2, (fo2, fi2),
                                 minval=-bound2, maxval=bound2, dtype=jnp.float32)
    bias2 = jax.random.uniform(kb2, (fo2,),
                               minval=-bound2, maxval=bound2, dtype=jnp.float32)
    expert2 = PallasBasicExpert(weight2, bias2)
    y2 = jax.block_until_ready(expert2(x2))
    y2_ref = x2 @ weight2.T + bias2
    assert y2.shape == (b2, fo2)
    assert jnp.allclose(y2, y2_ref, atol=5e-2, rtol=5e-2), "tiled-shape mismatch"

    # --- bf16 activations: exercises the scratch-accumulator kernel ----------
    fi3, fo3, b3 = 128, 128, 64
    kx3, kw3, kb3, key = jax.random.split(key, 4)
    x3 = jax.random.normal(kx3, (b3, fi3), dtype=jnp.float32).astype(jnp.bfloat16)
    bound3 = 1.0 / (fi3 ** 0.5)
    weight3 = jax.random.uniform(kw3, (fo3, fi3),
                                 minval=-bound3, maxval=bound3, dtype=jnp.float32)
    bias3 = jax.random.uniform(kb3, (fo3,),
                               minval=-bound3, maxval=bound3, dtype=jnp.float32)
    expert3 = PallasBasicExpert(weight3, bias3)
    y3 = jax.block_until_ready(expert3(x3))
    y3_ref = x3.astype(jnp.float32) @ weight3.T + bias3
    assert y3.shape == (b3, fo3) and y3.dtype == jnp.bfloat16
    assert jnp.allclose(y3.astype(jnp.float32), y3_ref, atol=5e-2, rtol=5e-2), \
        "bf16 path mismatch"

    print("KERNEL_OK")
</pallas_src>

<mosaic_0001>
module attributes {stable_mosaic.version = 11 : i64} {
  func.func @_linear_kernel_whole(%arg0: memref<8x32xf32, #tpu.memory_space<vmem>>, %arg1: memref<16x32xf32, #tpu.memory_space<vmem>>, %arg2: memref<1x16xf32, #tpu.memory_space<vmem>>, %arg3: memref<8x16xf32, #tpu.memory_space<vmem>>) attributes {dimension_semantics = [], scalar_prefetch = 0 : i64, scratch_operands = 0 : i64, tpu.core_type = #tpu.core_type<tc>} {
    %c0 = arith.constant 0 : index
    %c0_0 = arith.constant 0 : index
    %0 = vector.load %arg0[%c0, %c0_0] : memref<8x32xf32, #tpu.memory_space<vmem>>, vector<8x32xf32>
    %c0_1 = arith.constant 0 : index
    %c0_2 = arith.constant 0 : index
    %1 = vector.load %arg1[%c0_1, %c0_2] : memref<16x32xf32, #tpu.memory_space<vmem>>, vector<16x32xf32>
    %cst = arith.constant dense<0.000000e+00> : vector<8x16xf32>
    %2 = tpu.matmul %0, %1, %cst {dimension_numbers = #tpu.dot_dimension_numbers<[1], [1], [0], [0], [0, 0, 1, 0], [], []>} : vector<8x32xf32>, vector<16x32xf32>, vector<8x16xf32> -> vector<8x16xf32>
    %c0_3 = arith.constant 0 : index
    %c0_4 = arith.constant 0 : index
    %3 = vector.load %arg2[%c0_3, %c0_4] : memref<1x16xf32, #tpu.memory_space<vmem>>, vector<1x16xf32>
    %4 = vector.broadcast %3 : vector<1x16xf32> to vector<8x16xf32>
    %5 = arith.addf %2, %4 : vector<8x16xf32>
    %c0_5 = arith.constant 0 : index
    %c0_6 = arith.constant 0 : index
    %6 = vector.load %arg3[%c0_5, %c0_6] : memref<8x16xf32, #tpu.memory_space<vmem>>, vector<8x16xf32>
    tpu.vector_store %arg3[%c0_5, %c0_6], %5 {strides = array<i32>} : memref<8x16xf32, #tpu.memory_space<vmem>>, vector<8x16xf32>,
    return
  }
}

</mosaic_0001>

<llo_original>
// kernel: _forward_small.1
$region0: #{_forward_small.1}
  #allocation0 [shape = 'u32[]', space=smem, size = 0x4, offset = 0x4, fixed_abs, tag = 'smem constant byte address 0x4 - core index']
  #allocation1 [shape = 'u32[144,128]{1,0:T(1,128)}', space=vmem, size = 0x12000, scoped, tag = 'internal scratch']
  %s0 = inlined_call_operand.hbm [shape: f32[8,32], index: 0, kind: input, shape index: {}]
  %s1 = inlined_call_operand.hbm [shape: f32[16,32], index: 1, kind: input, shape index: {}]
  %s2 = inlined_call_operand.vmem [shape: f32[1,16], index: 2, kind: input, shape index: {}]
  %s3 = inlined_call_operand.hbm [shape: f32[8,16], index: 3, kind: output, shape index: {}]
  %s4 = sld [smem:[#allocation0]]
  $region30: #{_forward_small.1} parent=0
    _
  %s6 = ssub.s32 1, %s4
  %s7 = scalar_select 0, %s6, %s4
  $region1: #{_forward_small.1} parent=0
    #allocation2 [shape = 'u8[4096]{0}', space=vmem, size = 0x1000, scoped, tag = 'input window, operand 0, single buffered']
    #allocation3 [shape = 's32[1]{0}', space=sflag, size = 0x4, scoped, tag = 'scoped memory for _forward_small.1']
    #allocation4 [shape = 's32[1]{0}', space=sflag, size = 0x4, scoped, tag = 'scoped memory for _forward_small.1']
    #allocation5 [shape = 'u8[8192]{0}', space=vmem, size = 0x2000, scoped, tag = 'input window, operand 1, single buffered']
    #allocation6 [shape = 's32[1]{0}', space=sflag, size = 0x4, scoped, tag = 'scoped memory for _forward_small.1']
    #allocation7 [shape = 'u8[4096]{0}', space=vmem, size = 0x1000, scoped, tag = 'output window, operand 0, single buffered']
    %8 = vsyncpa [#allocation3], 0
    %9 = vsyncpa [#allocation6], 0
    %10 = vsyncpa [#allocation4], 0
    // Predicated region
    $region2: #{_forward_small.1} parent=1 // pred_check
      _
    $region3: #{_forward_small.1} parent=1 // pred_check_branch
      %12 = sbr.rel (0) target = $region5
    $region4: #{_forward_small.1} parent=1 // pred_region
      %s14 = ssub.s32 128, 128
      %15 = vsyncadd [#allocation3], %s14
      %s17 = sshll.u32 [#allocation2], 4
      %s18 = int_to_ptr.vmem [resolvable:$true] %s17
      %20 = dma.hbm_to_vmem [thread:$0]  %s0, 128, %s18, [#allocation3]
    $region5: #{_forward_small.1} parent=1 // pred_fallthru
      _
    // Predicated region
    $region6: #{_forward_small.1} parent=1 // pred_check
      _
    $region7: #{_forward_small.1} parent=1 // pred_check_branch
      %22 = sbr.rel (0) target = $region9
    $region8: #{_forward_small.1} parent=1 // pred_region
      %s24 = ssub.s32 256, 256
      %25 = vsyncadd [#allocation6], %s24
      %s26 = sshll.u32 [#allocation5], 4
      %s27 = int_to_ptr.vmem [resolvable:$true] %s26
      %32 = dma.hbm_to_vmem [thread:$0]  %s1, 256, %s27, [#allocation6], 128, 128, 8
    $region9: #{_forward_small.1} parent=1 // pred_fallthru
      _
    // Predicated region
    $region10: #{_forward_small.1} parent=1 // pred_check
      _
    $region11: #{_forward_small.1} parent=1 // pred_check_branch
      %34 = sbr.rel (0) target = $region13
    $region12: #{_forward_small.1} parent=1 // pred_region
      _
    $region13: #{_forward_small.1} parent=1 // pred_fallthru
      _
    // Predicated region
    $region14: #{_forward_small.1} parent=1 // pred_check
      _
    $region15: #{_forward_small.1} parent=1 // pred_check_branch
      %36 = sbr.rel (0) target = $region17
    $region16: #{_forward_small.1} parent=1 // pred_region
      %37 = dma.done [#allocation3], 128
    $region17: #{_forward_small.1} parent=1 // pred_fallthru
      _
    // Predicated region
    $region18: #{_forward_small.1} parent=1 // pred_check
      _
    $region19: #{_forward_small.1} parent=1 // pred_check_branch
      %39 = sbr.rel (0) target = $region21
    $region20: #{_forward_small.1} parent=1 // pred_region
      %40 = dma.done [#allocation6], 256
    $region21: #{_forward_small.1} parent=1 // pred_fallthru
      _
    %v41 = vld [vmem:[#allocation2] sm:$0xff]
    %v42 = vld [vmem:[#allocation5] sm:$0xff]
    %v43 = vld [vmem:[#allocation5 + $0x8] sm:$0xff]
    %v44 = vld [vmem:[%s2] sm:$0x1]
    %v46 = vlaneseq
    %v47 = vshrl.u32 %v46, 7
    %v48 = vsub.s32 0, %v47
    %v49 = vrot.slane %v44, %v48
    %vm51 = vcmask 261120
    %v53 = vsel %vm51, %v41, 0
    %v56 = vsel %vm51, %v42, 0
    %v59 = vsel %vm51, %v43, 0
    %61 = vmatprep.subr.mxu0 0.0
    %62 = vmatpush1.xpose.msra.mxu0 0.0
    %63 = vmatprep.subr.mxu0 0.0
    %64 = vmatpush1.xpose.msra.mxu0 0.0
    %65 = vmatprep.subr.mxu0 0.0
    %66 = vmatpush1.xpose.msra.mxu0 0.0
    %67 = vmatprep.subr.mxu0 0.0
    %68 = vmatpush1.xpose.msra.mxu0 0.0
    %69 = vmatprep.subr.mxu0 0.0
    %70 = vmatpush1.xpose.msra.mxu0 0.0
    %71 = vmatprep.subr.mxu0 0.0
    %72 = vmatpush1.xpose.msra.mxu0 0.0
    %73 = vmatprep.subr.mxu0 0.0
    %74 = vmatpush1.xpose.msra.mxu0 0.0
    %75 = vmatprep.subr.mxu0 0.0
    %76 = vmatpush1.xpose.msra.mxu0 0.0
    %77 = vmatprep.subr.mxu0 0.0
    %78 = vmatpush1.xpose.msra.mxu0 0.0
    %79 = vmatprep.subr.mxu0 0.0
    %80 = vmatpush1.xpose.msra.mxu0 0.0
    %81 = vmatprep.subr.mxu0 0.0
    %82 = vmatpush1.xpose.msra.mxu0 0.0
    %83 = vmatprep.subr.mxu0 0.0
    %84 = vmatpush1.xpose.msra.mxu0 0.0
    %85 = vmatprep.subr.mxu0 0.0
    %86 = vmatpush1.xpose.msra.mxu0 0.0
    %87 = vmatprep.subr.mxu0 0.0
    %88 = vmatpush1.xpose.msra.mxu0 0.0
    %89 = vmatprep.subr.mxu0 0.0
    %90 = vmatpush1.xpose.msra.mxu0 %v59
    %91 = vmatprep.subr.mxu0 0.0
    %92 = vmatpush1.xpose.msra.mxu0 %v56
    %93 = vmatprep.subr.mxu0 0.0
    %94 = vmatpush2.xpose.msra.mxu0 0.0
    %95 = vmatprep.subr.mxu0 0.0
    %96 = vmatpush2.xpose.msra.mxu0 0.0
    %97 = vmatprep.subr.mxu0 0.0
    %98 = vmatpush2.xpose.msra.mxu0 0.0
    %99 = vmatprep.subr.mxu0 0.0
    %100 = vmatpush2.xpose.msra.mxu0 0.0
    %101 = vmatprep.subr.mxu0 0.0
    %102 = vmatpush2.xpose.msra.mxu0 0.0
    %103 = vmatprep.subr.mxu0 0.0
    %104 = vmatpush2.xpose.msra.mxu0 0.0
    %105 = vmatprep.subr.mxu0 0.0
    %106 = vmatpush2.xpose.msra.mxu0 0.0
    %107 = vmatprep.subr.mxu0 0.0
    %108 = vmatpush2.xpose.msra.mxu0 0.0
    %109 = vmatprep.subr.mxu0 0.0
    %110 = vmatpush2.xpose.msra.mxu0 0.0
    %111 = vmatprep.subr.mxu0 0.0
    %112 = vmatpush2.xpose.msra.mxu0 0.0
    %113 = vmatprep.subr.mxu0 0.0
    %114 = vmatpush2.xpose.msra.mxu0 0.0
    %115 = vmatprep.subr.mxu0 0.0
    %116 = vmatpush2.xpose.msra.mxu0 0.0
    %117 = vmatprep.subr.mxu0 0.0
    %118 = vmatpush2.xpose.msra.mxu0 0.0
    %119 = vmatprep.subr.mxu0 0.0
    %120 = vmatpush2.xpose.msra.mxu0 0.0
    %121 = vmatprep.subr.mxu0 0.0
    %122 = vmatpush2.xpose.msra.mxu0 0.0
    %123 = vmatprep.subr.mxu0 0.0
    %124 = vmatpush2.xpose.msra.mxu0 0.0
    %125 = vmatprep.mubr.f32.mxu0 0.0
    %126 = vmatmul.mubr.f32.gmra.mxu0 %v53
    %v127 = vpop.f32.mrf.mxu0
    %v128 = vadd.f32 %v49, %v127
    %v129 = vpop.f32.mrf.mxu0
    %130 = vdwg.mxu0
    %vm131 = vcmask 130048
    %132 = vst.msk [vmem:[#allocation7] sm:$0xff] %vm131, %v128
    // Predicated region
    $region22: #{_forward_small.1} parent=1 // pred_check
      _
    $region23: #{_forward_small.1} parent=1 // pred_check_branch
      %134 = sbr.rel (0) target = $region25
    $region24: #{_forward_small.1} parent=1 // pred_region
      %s136 = ssub.s32 128, 128
      %137 = vsyncadd [#allocation4], %s136
      %s139 = sshll.u32 [#allocation7], 4
      %s140 = int_to_ptr.vmem [resolvable:$true] %s139
      %142 = dma.vmem_to_hbm [thread:$0]  %s140, 128, %s3, [#allocation4]
    $region25: #{_forward_small.1} parent=1 // pred_fallthru
      _
    // Predicated region
    $region26: #{_forward_small.1} parent=1 // pred_check
      _
    $region27: #{_forward_small.1} parent=1 // pred_check_branch
      %144 = sbr.rel (0) target = $region29
    $region28: #{_forward_small.1} parent=1 // pred_region
      %145 = dma.done [#allocation4], 128
    $region29: #{_forward_small.1} parent=1 // pred_fallthru
      _
    %146 = vsyncpa [#allocation3], 1
    %147 = vsyncpa [#allocation6], 1
    %148 = vsyncpa [#allocation4], 1

</llo_original>
